<compile_context>
chip_gen: v7x
topology: tpu7x:2x2x1
jax: 0.10.0
libtpu: 0.0.40
codegen_flags: <defaults>
</compile_context>

<pallas_src>
import jax
import jax.numpy as jnp
from jax import lax
from jax.experimental import pallas as pl
from jax.experimental.pallas import tpu as pltpu


def _round_up(x, m):
    return (x + m - 1) // m * m


def _interp_kernel(lower_ref, upper_ref, knot_ref, t_ref, out_ref):
    t = t_ref[...]                       # (1, tile)   lane-dense queries
    lower = lower_ref[...]               # (k_pad, 1)  segment lower bound
    upper = upper_ref[...]               # (k_pad, 1)  segment upper bound

    # Exactly one segment row is True per query column (intervals partition
    # the real line; padded rows have lower=+inf / upper=-inf -> never fire).
    sel = (lower <= t) & (t < upper)                      # (k_pad, tile) bool

    # One-hot 0/1 mask (exact in f32/bf16) -> gather t0/v0/slope via a single
    # skinny MXU matmul in the free "vector extended" slot.
    sel_f = jnp.where(sel, 1.0, 0.0).astype(jnp.float32)  # (k_pad, tile)
    gathered = jnp.dot(knot_ref[...], sel_f,
                       preferred_element_type=jnp.float32,
                       precision=lax.Precision.HIGHEST)   # (8, tile)

    t0 = gathered[0:1, :]
    v0 = gathered[1:2, :]
    sl = gathered[2:3, :]
    out_ref[...] = v0 + sl * (t - t0)


def linear_interpolation(times, values, t, *, tile=2048):
    """times, values: (N,) f32, times strictly increasing, N >= 2. t: (T,) f32."""
    times = jnp.asarray(times, jnp.float32)
    values = jnp.asarray(values, jnp.float32)
    t = jnp.asarray(t, jnp.float32)

    n = times.shape[0]
    assert n >= 2, "need at least two knots"
    n_seg = n - 1
    # Knots (segments) live on the sublane axis / matmul K axis.
    k_pad = _round_up(n_seg, 128)

    # Per-segment data (all finite; zero padding is safe for the MXU gather).
    seg_t0 = times[:-1]                                           # (n_seg,)
    seg_v0 = values[:-1]                                          # (n_seg,)
    slope = (values[1:] - values[:-1]) / (times[1:] - times[:-1])  # (n_seg,)

    knot = jnp.zeros((8, k_pad), jnp.float32)
    knot = knot.at[0, :n_seg].set(seg_t0)
    knot = knot.at[1, :n_seg].set(seg_v0)
    knot = knot.at[2, :n_seg].set(slope)

    # Shifted bounds (comparison operands only -> inf sentinels are fine here).
    neg_inf = jnp.full((1,), -jnp.inf, dtype=jnp.float32)
    pos_inf = jnp.full((1,), jnp.inf, dtype=jnp.float32)
    lower = jnp.concatenate([neg_inf, times[1:n - 1]])            # (n_seg,)
    upper = jnp.concatenate([times[1:n - 1], pos_inf])            # (n_seg,)
    lower_p = jnp.pad(lower, (0, k_pad - n_seg), constant_values=float("inf"))
    upper_p = jnp.pad(upper, (0, k_pad - n_seg), constant_values=float("-inf"))
    lower_2d = lower_p.reshape(k_pad, 1)
    upper_2d = upper_p.reshape(k_pad, 1)

    # Lane-dense query layout: (1, TQ_pad), blocked (1, tile).
    tq = t.shape[0]
    tq_pad = _round_up(max(tq, 1), 128)
    tile = int(tile)
    if tq_pad >= 256:
        # Cap the tile so the grid has >= 2 steps: lets "parallel" shard the
        # grid across v7x's two TensorCores (no effect on v5e/v6e).
        tile = min(tile, max(128, (tq_pad // 2) // 128 * 128))
    else:
        tile = min(tile, tq_pad)
    tile = _round_up(tile, 128)
    tq_pad = _round_up(tq_pad, tile)
    t_2d = jnp.pad(t, (0, tq_pad - tq)).reshape(1, tq_pad)   # pad with 0.0

    out = pl.pallas_call(
        _interp_kernel,
        out_shape=jax.ShapeDtypeStruct((1, tq_pad), jnp.float32),
        grid_spec=pltpu.PrefetchScalarGridSpec(
            num_scalar_prefetch=0,
            grid=(tq_pad // tile,),
            in_specs=[
                pl.BlockSpec((k_pad, 1), lambda i: (0, 0)),   # lower bounds
                pl.BlockSpec((k_pad, 1), lambda i: (0, 0)),   # upper bounds
                pl.BlockSpec((8, k_pad), lambda i: (0, 0)),   # [t0; v0; slope]
                pl.BlockSpec((1, tile), lambda i: (0, i)),    # query t
            ],
            out_specs=pl.BlockSpec((1, tile), lambda i: (0, i)),
        ),
        compiler_params=pltpu.CompilerParams(
            dimension_semantics=("parallel",),
            # Real footprint is a few MiB even at tile=2048 (mask temporaries
            # dominate); 32 MiB is safe on v5e's 16 MiB scoped default and
            # leaves headroom within v7x's 64 MiB physical VMEM.
            vmem_limit_bytes=32 * 1024 * 1024),
    )(lower_2d, upper_2d, knot, t_2d)

    return out.reshape(tq_pad)[:tq]


def _reference(times, values, t):
    idx = jnp.searchsorted(times, t, side="right")
    idx = jnp.clip(idx, 1, times.shape[0] - 1)
    t0 = times[idx - 1]
    t1 = times[idx]
    v0 = values[idx - 1]
    v1 = values[idx]
    frac = (t - t0) / (t1 - t0)
    return v0 + frac * (v1 - v0)


if __name__ == "__main__":
    key = jax.random.PRNGKey(0)
    k1, k2, k3 = jax.random.split(key, 3)

    # Deterministic synthetic "FLUXNET-like" knots: strictly increasing times.
    n_knots = 200
    dt = jax.random.uniform(k1, (n_knots,), minval=0.25, maxval=1.0)
    times = jnp.cumsum(dt).astype(jnp.float32)          # strictly increasing
    values = jax.random.normal(k2, (n_knots,), dtype=jnp.float32)

    # Query points spanning (and slightly outside) the knot range.
    n_query = 256
    t = jax.random.uniform(
        k3, (n_query,), minval=float(times[0]) - 0.1,
        maxval=float(times[-1]) + 0.1).astype(jnp.float32)

    out = linear_interpolation(times, values, t)
    out = jax.block_until_ready(out)

    ref = _reference(times, values, t)
    assert out.shape == (n_query,)
    assert jnp.allclose(out, ref, atol=1e-5, rtol=1e-5), (
        float(jnp.max(jnp.abs(out - ref))))
    print("KERNEL_OK")
</pallas_src>

<mosaic_0001>
module attributes {stable_mosaic.version = 11 : i64} {
  func.func @_interp_kernel(%arg0: i32, %arg1: memref<256x1xf32, #tpu.memory_space<vmem>>, %arg2: memref<256x1xf32, #tpu.memory_space<vmem>>, %arg3: memref<8x256xf32, #tpu.memory_space<vmem>>, %arg4: memref<1x128xf32, #tpu.memory_space<vmem>>, %arg5: memref<1x128xf32, #tpu.memory_space<vmem>>) attributes {dimension_semantics = [#tpu.dimension_semantics<parallel>], iteration_bounds = array<i64: 2>, scalar_prefetch = 0 : i64, scratch_operands = 0 : i64, tpu.core_type = #tpu.core_type<tc>, window_params = [{pipeline_mode = #tpu.pipeline_mode<synchronous>, transform_indices = @transform_0, window_bounds = array<i64: 256, 1>}, {pipeline_mode = #tpu.pipeline_mode<synchronous>, transform_indices = @transform_1, window_bounds = array<i64: 256, 1>}, {pipeline_mode = #tpu.pipeline_mode<synchronous>, transform_indices = @transform_2, window_bounds = array<i64: 8, 256>}, {transform_indices = @transform_3, window_bounds = array<i64: 1, 128>}, {transform_indices = @transform_4, window_bounds = array<i64: 1, 128>}]} {
    %c0 = arith.constant 0 : index
    %c0_0 = arith.constant 0 : index
    %0 = vector.load %arg4[%c0, %c0_0] : memref<1x128xf32, #tpu.memory_space<vmem>>, vector<1x128xf32>
    %c0_1 = arith.constant 0 : index
    %c0_2 = arith.constant 0 : index
    %1 = vector.load %arg1[%c0_1, %c0_2] : memref<256x1xf32, #tpu.memory_space<vmem>>, vector<256x1xf32>
    %c0_3 = arith.constant 0 : index
    %c0_4 = arith.constant 0 : index
    %2 = vector.load %arg2[%c0_3, %c0_4] : memref<256x1xf32, #tpu.memory_space<vmem>>, vector<256x1xf32>
    %3 = vector.broadcast %1 : vector<256x1xf32> to vector<256x128xf32>
    %4 = vector.broadcast %0 : vector<1x128xf32> to vector<256x128xf32>
    %5 = arith.cmpf ole, %3, %4 : vector<256x128xf32>
    %6 = vector.broadcast %0 : vector<1x128xf32> to vector<256x128xf32>
    %7 = vector.broadcast %2 : vector<256x1xf32> to vector<256x128xf32>
    %8 = arith.cmpf olt, %6, %7 : vector<256x128xf32>
    %9 = arith.andi %5, %8 : vector<256x128xi1>
    %cst = arith.constant 1.000000e+00 : f32
    %cst_5 = arith.constant 0.000000e+00 : f32
    %10 = vector.broadcast %cst : f32 to vector<256x128xf32>
    %11 = vector.broadcast %cst_5 : f32 to vector<256x128xf32>
    %12 = arith.select %9, %10, %11 : vector<256x128xi1>, vector<256x128xf32>
    %c0_6 = arith.constant 0 : index
    %c0_7 = arith.constant 0 : index
    %13 = vector.load %arg3[%c0_6, %c0_7] : memref<8x256xf32, #tpu.memory_space<vmem>>, vector<8x256xf32>
    %cst_8 = arith.constant dense<0.000000e+00> : vector<8x128xf32>
    %14 = tpu.matmul %13, %12, %cst_8 {dimension_numbers = #tpu.dot_dimension_numbers<[1], [0], [0], [1], [0, 0, 1, 1], [], []>, precision = #tpu.contract_precision<fp32>} : vector<8x256xf32>, vector<256x128xf32>, vector<8x128xf32> -> vector<8x128xf32>
    %15 = vector.extract_strided_slice %14 {offsets = [0, 0], sizes = [1, 128], strides = [1, 1]} : vector<8x128xf32> to vector<1x128xf32>
    %16 = vector.extract_strided_slice %14 {offsets = [1, 0], sizes = [1, 128], strides = [1, 1]} : vector<8x128xf32> to vector<1x128xf32>
    %17 = vector.extract_strided_slice %14 {offsets = [2, 0], sizes = [1, 128], strides = [1, 1]} : vector<8x128xf32> to vector<1x128xf32>
    %18 = arith.subf %0, %15 : vector<1x128xf32>
    %19 = arith.mulf %17, %18 : vector<1x128xf32>
    %20 = arith.addf %16, %19 : vector<1x128xf32>
    %c0_9 = arith.constant 0 : index
    %c0_10 = arith.constant 0 : index
    %21 = vector.load %arg5[%c0_9, %c0_10] : memref<1x128xf32, #tpu.memory_space<vmem>>, vector<1x128xf32>
    tpu.vector_store %arg5[%c0_9, %c0_10], %20 {strides = array<i32>} : memref<1x128xf32, #tpu.memory_space<vmem>>, vector<1x128xf32>,
    return
  }
  func.func @transform_0(%arg0: i32) -> (i32, i32) {
    %c0_i32 = arith.constant 0 : i32
    %c0_i32_0 = arith.constant 0 : i32
    %c0_i32_1 = arith.constant 0 : i32
    return %c0_i32, %c0_i32_0 : i32, i32
  }
  func.func @transform_1(%arg0: i32) -> (i32, i32) {
    %c0_i32 = arith.constant 0 : i32
    %c0_i32_0 = arith.constant 0 : i32
    %c0_i32_1 = arith.constant 0 : i32
    return %c0_i32, %c0_i32_0 : i32, i32
  }
  func.func @transform_2(%arg0: i32) -> (i32, i32) {
    %c0_i32 = arith.constant 0 : i32
    %c0_i32_0 = arith.constant 0 : i32
    %c0_i32_1 = arith.constant 0 : i32
    return %c0_i32, %c0_i32_0 : i32, i32
  }
  func.func @transform_3(%arg0: i32) -> (i32, i32) {
    %c0_i32 = arith.constant 0 : i32
    %c0_i32_0 = arith.constant 0 : i32
    return %c0_i32, %arg0 : i32, i32
  }
  func.func @transform_4(%arg0: i32) -> (i32, i32) {
    %c0_i32 = arith.constant 0 : i32
    %c0_i32_0 = arith.constant 0 : i32
    return %c0_i32, %arg0 : i32, i32
  }
}

</mosaic_0001>

<llo_original>
// kernel: tpu_custom_call.1
$region0: #{tpu_custom_call.1}
  #allocation0 [shape = 'u32[]', space=smem, size = 0x4, offset = 0x4, fixed_abs, tag = 'smem constant byte address 0x4 - core index']
  #allocation1 [shape = 'u32[144,128]{1,0:T(1,128)}', space=vmem, size = 0x12000, scoped, tag = 'internal scratch']
  %s0 = inlined_call_operand.vmem [shape: f32[256,1], index: 0, kind: input, shape index: {}]
  %s1 = inlined_call_operand.vmem [shape: f32[256,1], index: 1, kind: input, shape index: {}]
  %s2 = inlined_call_operand.vmem [shape: f32[8,256], index: 2, kind: input, shape index: {}]
  %s3 = inlined_call_operand.vmem [shape: f32[1,256], index: 3, kind: input, shape index: {}]
  %s4 = inlined_call_operand.hbm [shape: f32[1,256], index: 4, kind: output, shape index: {}]
  %s5 = sld [smem:[#allocation0]]
  $region49: #{tpu_custom_call.1} parent=0
    _
  %s7 = ssub.s32 1, %s5
  %s8 = scalar_select 0, %s7, %s5
  $region1: #{tpu_custom_call.1} parent=0
    #allocation2 [shape = 'u8[1024]{0}', space=vmem, size = 0x400, scoped, tag = 'output window, operand 0']
    #allocation3 [shape = 's32[2]{0}', space=sflag, size = 0x8, scoped, tag = 'scoped memory for tpu_custom_call.1']
    %9 = vsyncpa [#allocation3], 0
    %s10 = scalar_lea.sflag [#allocation3], 1
    %11 = vsyncpa %s10, 0
    loop: start=0, step=1, limit=4
    $region2: #{tpu_custom_call.1} parent=1 // loop_pre_header
      _
    $region3: #{tpu_custom_call.1} parent=1 // loop_header
      %s13 = sphi 0, %s17
      %p14 = scmp.ge.s32.totalorder %s13, 4
      %s21 = sphi 0, %s21
      %s23 = sphi 0, %s21
      %s24 = sphi 0, %s23
      %s38 = sphi 0, %s24
      %s42 = sphi 0, %s42
      %s44 = sphi 0, %s42
      %s45 = sphi 0, %s44
      %s59 = sphi 0, %s45
      %s63 = sphi 0, %s63
      %s65 = sphi 0, %s63
      %s66 = sphi 0, %s65
      %s80 = sphi 0, %s66
      %s86 = sphi 0, %s88
      %s89 = sphi 0, %s86
      %s90 = sphi 0, %s89
      %s106 = sphi 0, %s90
      %s112 = sphi 0, %s114
      %s115 = sphi 0, %s112
      %s116 = sphi 0, %s115
      %s132 = sphi 0, %s116
    $region4: #{tpu_custom_call.1} parent=1 // loop_header_branch
      %16 = sbr.rel (%p14) target = $region8
    $region5: #{tpu_custom_call.1} parent=1 // loop_body
      %s18 = ssub.s32 %s13, 1
      %s19 = ssub.s32 %s13, 2
      %s20 = sadd.s32 %s13, 1
      %s22 = sadd.s32 %s21, 1
      %p25 = scmp.eq.s32.totalorder %s13, 1
      %p26 = scmp.ne.s32.totalorder %s21, %s23
      %p27 = scmp.eq.s32.totalorder %s13, 0
      %p28 = por %p26, %p27
      %p29 = scmp.ne.s32.totalorder %s21, %s23
      %p30 = scmp.eq.s32.totalorder %s18, 1
      %p31 = por %p29, %p30
      %p32 = scmp.ne.s32.totalorder %s23, %s24
      %p33 = scmp.eq.s32.totalorder %s18, 0
      %p34 = por %p32, %p33
      %p35 = scmp.ne.s32.totalorder %s23, %s24
      %p36 = scmp.eq.s32.totalorder %s19, 1
      %p37 = por %p35, %p36
      %p39 = scmp.ne.s32.totalorder %s24, %s38
      %p40 = scmp.eq.s32.totalorder %s19, 0
      %p41 = por %p39, %p40
      %s43 = sadd.s32 %s42, 1
      %p46 = scmp.eq.s32.totalorder %s13, 1
      %p47 = scmp.ne.s32.totalorder %s42, %s44
      %p48 = scmp.eq.s32.totalorder %s13, 0
      %p49 = por %p47, %p48
      %p50 = scmp.ne.s32.totalorder %s42, %s44
      %p51 = scmp.eq.s32.totalorder %s18, 1
      %p52 = por %p50, %p51
      %p53 = scmp.ne.s32.totalorder %s44, %s45
      %p54 = scmp.eq.s32.totalorder %s18, 0
      %p55 = por %p53, %p54
      %p56 = scmp.ne.s32.totalorder %s44, %s45
      %p57 = scmp.eq.s32.totalorder %s19, 1
      %p58 = por %p56, %p57
      %p60 = scmp.ne.s32.totalorder %s45, %s59
      %p61 = scmp.eq.s32.totalorder %s19, 0
      %p62 = por %p60, %p61
      %s64 = sadd.s32 %s63, 1
      %p67 = scmp.eq.s32.totalorder %s13, 1
      %p68 = scmp.ne.s32.totalorder %s63, %s65
      %p69 = scmp.eq.s32.totalorder %s13, 0
      %p70 = por %p68, %p69
      %p71 = scmp.ne.s32.totalorder %s63, %s65
      %p72 = scmp.eq.s32.totalorder %s18, 1
      %p73 = por %p71, %p72
      %p74 = scmp.ne.s32.totalorder %s65, %s66
      %p75 = scmp.eq.s32.totalorder %s18, 0
      %p76 = por %p74, %p75
      %p77 = scmp.ne.s32.totalorder %s65, %s66
      %p78 = scmp.eq.s32.totalorder %s19, 1
      %p79 = por %p77, %p78
      %p81 = scmp.ne.s32.totalorder %s66, %s80
      %p82 = scmp.eq.s32.totalorder %s19, 0
      %p83 = por %p81, %p82
      %s84 = ssub.s32 %s13, %s20
      %p85 = scmp.eq.s32.totalorder %s84, 0
      %s87 = sadd.s32 %s86, 1
      %s88 = scalar_select %p85, %s86, %s87
      %p91 = pneg %p85
      %p92 = scmp.eq.s32.totalorder %s13, 1
      %p93 = por %p91, %p92
      %p94 = scmp.ne.s32.totalorder %s86, %s89
      %p95 = scmp.eq.s32.totalorder %s13, 0
      %p96 = por %p94, %p95
      %p97 = scmp.ne.s32.totalorder %s86, %s89
      %p98 = scmp.eq.s32.totalorder %s18, 1
      %p99 = por %p97, %p98
      %p100 = scmp.ne.s32.totalorder %s89, %s90
      %p101 = scmp.eq.s32.totalorder %s18, 0
      %p102 = por %p100, %p101
      %p103 = scmp.ne.s32.totalorder %s89, %s90
      %p104 = scmp.eq.s32.totalorder %s19, 1
      %p105 = por %p103, %p104
      %p107 = scmp.ne.s32.totalorder %s90, %s106
      %p108 = scmp.eq.s32.totalorder %s19, 0
      %p109 = por %p107, %p108
      %s110 = ssub.s32 %s13, %s20
      %p111 = scmp.eq.s32.totalorder %s110, 0
      %s113 = sadd.s32 %s112, 1
      %s114 = scalar_select %p111, %s112, %s113
      %p117 = pneg %p111
      %p118 = scmp.eq.s32.totalorder %s13, 1
      %p119 = por %p117, %p118
      %p120 = scmp.ne.s32.totalorder %s112, %s115
      %p121 = scmp.eq.s32.totalorder %s13, 0
      %p122 = por %p120, %p121
      %p123 = scmp.ne.s32.totalorder %s112, %s115
      %p124 = scmp.eq.s32.totalorder %s18, 1
      %p125 = por %p123, %p124
      %p126 = scmp.ne.s32.totalorder %s115, %s116
      %p127 = scmp.eq.s32.totalorder %s18, 0
      %p128 = por %p126, %p127
      %p129 = scmp.ne.s32.totalorder %s115, %s116
      %p130 = scmp.eq.s32.totalorder %s19, 1
      %p131 = por %p129, %p130
      %p133 = scmp.ne.s32.totalorder %s116, %s132
      %p134 = scmp.eq.s32.totalorder %s19, 0
      %p135 = por %p133, %p134
      %p136 = scmp.le.s32.totalorder 1, %s13
      %p137 = scmp.lt.s32.totalorder %s13, 3
      %p138 = pnand %p136, %p137
      %p139 = pneg %p138
      // Predicated region
      $region9: #{tpu_custom_call.1} parent=5 // pred_check
        _
      $region10: #{tpu_custom_call.1} parent=5 // pred_check_branch
        %141 = sbr.rel (%p138) target = $region12
      $region11: #{tpu_custom_call.1} parent=5 // pred_region
        %s142 = ssub.s32 %s13, 1
        // Predicated region
        $region13: #{tpu_custom_call.1} parent=11 // pred_check
          %p143 = pneg %p34
        $region14: #{tpu_custom_call.1} parent=11 // pred_check_branch
          %145 = sbr.rel (%p143) target = $region16
        $region15: #{tpu_custom_call.1} parent=11 // pred_region
          _
        $region16: #{tpu_custom_call.1} parent=11 // pred_fallthru
          _
        // Predicated region
        $region17: #{tpu_custom_call.1} parent=11 // pred_check
          %p146 = pneg %p55
        $region18: #{tpu_custom_call.1} parent=11 // pred_check_branch
          %148 = sbr.rel (%p146) target = $region20
        $region19: #{tpu_custom_call.1} parent=11 // pred_region
          _
        $region20: #{tpu_custom_call.1} parent=11 // pred_fallthru
          _
        // Predicated region
        $region21: #{tpu_custom_call.1} parent=11 // pred_check
          %p149 = pneg %p76
        $region22: #{tpu_custom_call.1} parent=11 // pred_check_branch
          %151 = sbr.rel (%p149) target = $region24
        $region23: #{tpu_custom_call.1} parent=11 // pred_region
          _
        $region24: #{tpu_custom_call.1} parent=11 // pred_fallthru
          _
      $region12: #{tpu_custom_call.1} parent=5 // pred_fallthru
        _
      %p152 = scmp.lt.s32.totalorder %s13, 2
      // Predicated region
      $region25: #{tpu_custom_call.1} parent=5 // pred_check
        %p153 = pneg %p152
      $region26: #{tpu_custom_call.1} parent=5 // pred_check_branch
        %155 = sbr.rel (%p153) target = $region28
      $region27: #{tpu_custom_call.1} parent=5 // pred_region
        // Predicated region
        $region29: #{tpu_custom_call.1} parent=27 // pred_check
          %p156 = pneg %p96
        $region30: #{tpu_custom_call.1} parent=27 // pred_check_branch
          %158 = sbr.rel (%p156) target = $region32
        $region31: #{tpu_custom_call.1} parent=27 // pred_region
          %p159 = scmp.lt.s32.totalorder %s13, 1
          %s160 = scalar_select %p159, %s13, 1
          %s161 = scalar_lea.vmem %s3, %s160
        $region32: #{tpu_custom_call.1} parent=27 // pred_fallthru
          _
      $region28: #{tpu_custom_call.1} parent=5 // pred_fallthru
        _
      %p162 = scmp.le.s32.totalorder 1, %s13
      %p163 = scmp.lt.s32.totalorder %s13, 3
      %p164 = pnand %p162, %p163
      %p165 = pneg %p164
      // Predicated region
      $region33: #{tpu_custom_call.1} parent=5 // pred_check
        _
      $region34: #{tpu_custom_call.1} parent=5 // pred_check_branch
        %167 = sbr.rel (%p164) target = $region36
      $region35: #{tpu_custom_call.1} parent=5 // pred_region
        %s168 = ssub.s32 %s13, 1
        %p169 = pneg %p34
        %p170 = pneg %p31
        %p171 = pneg %p55
        %p172 = pneg %p52
        %p173 = pneg %p76
        %p174 = pneg %p73
        %p175 = scmp.lt.s32.totalorder %s18, 1
        %s176 = scalar_select %p175, %s18, 1
        %s177 = scalar_lea.vmem %s3, %s176
        %p178 = pneg %p102
        %p179 = pneg %p99
        %p180 = pneg %p128
        %p181 = pneg %p125
        %s182 = sand.u32 %s115, 1
        %s183 = scalar_lea.sflag [#allocation3], %s182
        %s184 = sand.u32 %s115, 1
        %s185 = scalar_lea.vmem [#allocation2], %s184
        %p186 = scmp.lt.s32.totalorder %s18, 1
        %s187 = scalar_select %p186, %s18, 1
        %s188 = scalar_lea.vmem %s3, %s187
        %v189 = vld [vmem:[%s188] sm:$0x1]
        %v190 = vld [vmem:[%s0] sm:$0xff]
        %v191 = vld [vmem:[%s0 + $0x8] sm:$0xff]
        %v192 = vld [vmem:[%s0 + $0x10] sm:$0xff]
        %v193 = vld [vmem:[%s0 + $0x18] sm:$0xff]
        %v194 = vld [vmem:[%s0 + $0x20] sm:$0xff]
        %v195 = vld [vmem:[%s0 + $0x28] sm:$0xff]
        %v196 = vld [vmem:[%s0 + $0x30] sm:$0xff]
        %v197 = vld [vmem:[%s0 + $0x38] sm:$0xff]
        %v198 = vld [vmem:[%s0 + $0x40] sm:$0xff]
        %v199 = vld [vmem:[%s0 + $0x48] sm:$0xff]
        %v200 = vld [vmem:[%s0 + $0x50] sm:$0xff]
        %v201 = vld [vmem:[%s0 + $0x58] sm:$0xff]
        %v202 = vld [vmem:[%s0 + $0x60] sm:$0xff]
        %v203 = vld [vmem:[%s0 + $0x68] sm:$0xff]
        %v204 = vld [vmem:[%s0 + $0x70] sm:$0xff]
        %v205 = vld [vmem:[%s0 + $0x78] sm:$0xff]
        %v206 = vld [vmem:[%s0 + $0x80] sm:$0xff]
        %v207 = vld [vmem:[%s0 + $0x88] sm:$0xff]
        %v208 = vld [vmem:[%s0 + $0x90] sm:$0xff]
        %v209 = vld [vmem:[%s0 + $0x98] sm:$0xff]
        %v210 = vld [vmem:[%s0 + $0xa0] sm:$0xff]
        %v211 = vld [vmem:[%s0 + $0xa8] sm:$0xff]
        %v212 = vld [vmem:[%s0 + $0xb0] sm:$0xff]
        %v213 = vld [vmem:[%s0 + $0xb8] sm:$0xff]
        %v214 = vld [vmem:[%s0 + $0xc0] sm:$0xff]
        %v215 = vld [vmem:[%s0 + $0xc8] sm:$0xff]
        %v216 = vld [vmem:[%s0 + $0xd0] sm:$0xff]
        %v217 = vld [vmem:[%s0 + $0xd8] sm:$0xff]
        %v218 = vld [vmem:[%s0 + $0xe0] sm:$0xff]
        %v219 = vld [vmem:[%s0 + $0xe8] sm:$0xff]
        %v220 = vld [vmem:[%s0 + $0xf0] sm:$0xff]
        %v221 = vld [vmem:[%s0 + $0xf8] sm:$0xff]
        %v222 = vld [vmem:[%s1] sm:$0xff]
        %v223 = vld [vmem:[%s1 + $0x8] sm:$0xff]
        %v224 = vld [vmem:[%s1 + $0x10] sm:$0xff]
        %v225 = vld [vmem:[%s1 + $0x18] sm:$0xff]
        %v226 = vld [vmem:[%s1 + $0x20] sm:$0xff]
        %v227 = vld [vmem:[%s1 + $0x28] sm:$0xff]
        %v228 = vld [vmem:[%s1 + $0x30] sm:$0xff]
        %v229 = vld [vmem:[%s1 + $0x38] sm:$0xff]
        %v230 = vld [vmem:[%s1 + $0x40] sm:$0xff]
        %v231 = vld [vmem:[%s1 + $0x48] sm:$0xff]
        %v232 = vld [vmem:[%s1 + $0x50] sm:$0xff]
        %v233 = vld [vmem:[%s1 + $0x58] sm:$0xff]
        %v234 = vld [vmem:[%s1 + $0x60] sm:$0xff]
        %v235 = vld [vmem:[%s1 + $0x68] sm:$0xff]
        %v236 = vld [vmem:[%s1 + $0x70] sm:$0xff]
        %v237 = vld [vmem:[%s1 + $0x78] sm:$0xff]
        %v238 = vld [vmem:[%s1 + $0x80] sm:$0xff]
        %v239 = vld [vmem:[%s1 + $0x88] sm:$0xff]
        %v240 = vld [vmem:[%s1 + $0x90] sm:$0xff]
        %v241 = vld [vmem:[%s1 + $0x98] sm:$0xff]
        %v242 = vld [vmem:[%s1 + $0xa0] sm:$0xff]
        %v243 = vld [vmem:[%s1 + $0xa8] sm:$0xff]
        %v244 = vld [vmem:[%s1 + $0xb0] sm:$0xff]
        %v245 = vld [vmem:[%s1 + $0xb8] sm:$0xff]
        %v246 = vld [vmem:[%s1 + $0xc0] sm:$0xff]
        %v247 = vld [vmem:[%s1 + $0xc8] sm:$0xff]
        %v248 = vld [vmem:[%s1 + $0xd0] sm:$0xff]
        %v249 = vld [vmem:[%s1 + $0xd8] sm:$0xff]
        %v250 = vld [vmem:[%s1 + $0xe0] sm:$0xff]
        %v251 = vld [vmem:[%s1 + $0xe8] sm:$0xff]
        %v252 = vld [vmem:[%s1 + $0xf0] sm:$0xff]
        %v253 = vld [vmem:[%s1 + $0xf8] sm:$0xff]
        %255 = vset.pattern.permute.xlu0 0
        %256 = vperm.xlu0 %255, %v190
        %v257 = vpop.permute.xlu0 %256
        %260 = vset.pattern.permute.xlu0 0
        %261 = vperm.xlu0 %260, %v191
        %v262 = vpop.permute.xlu0 %261
        %265 = vset.pattern.permute.xlu0 0
        %266 = vperm.xlu0 %265, %v192
        %v267 = vpop.permute.xlu0 %266
        %270 = vset.pattern.permute.xlu0 0
        %271 = vperm.xlu0 %270, %v193
        %v272 = vpop.permute.xlu0 %271
        %275 = vset.pattern.permute.xlu0 0
        %276 = vperm.xlu0 %275, %v194
        %v277 = vpop.permute.xlu0 %276
        %280 = vset.pattern.permute.xlu0 0
        %281 = vperm.xlu0 %280, %v195
        %v282 = vpop.permute.xlu0 %281
        %285 = vset.pattern.permute.xlu0 0
        %286 = vperm.xlu0 %285, %v196
        %v287 = vpop.permute.xlu0 %286
        %290 = vset.pattern.permute.xlu0 0
        %291 = vperm.xlu0 %290, %v197
        %v292 = vpop.permute.xlu0 %291
        %295 = vset.pattern.permute.xlu0 0
        %296 = vperm.xlu0 %295, %v198
        %v297 = vpop.permute.xlu0 %296
        %300 = vset.pattern.permute.xlu0 0
        %301 = vperm.xlu0 %300, %v199
        %v302 = vpop.permute.xlu0 %301
        %305 = vset.pattern.permute.xlu0 0
        %306 = vperm.xlu0 %305, %v200
        %v307 = vpop.permute.xlu0 %306
        %310 = vset.pattern.permute.xlu0 0
        %311 = vperm.xlu0 %310, %v201
        %v312 = vpop.permute.xlu0 %311
        %315 = vset.pattern.permute.xlu0 0
        %316 = vperm.xlu0 %315, %v202
        %v317 = vpop.permute.xlu0 %316
        %320 = vset.pattern.permute.xlu0 0
        %321 = vperm.xlu0 %320, %v203
        %v322 = vpop.permute.xlu0 %321
        %325 = vset.pattern.permute.xlu0 0
        %326 = vperm.xlu0 %325, %v204
        %v327 = vpop.permute.xlu0 %326
        %330 = vset.pattern.permute.xlu0 0
        %331 = vperm.xlu0 %330, %v205
        %v332 = vpop.permute.xlu0 %331
        %335 = vset.pattern.permute.xlu0 0
        %336 = vperm.xlu0 %335, %v206
        %v337 = vpop.permute.xlu0 %336
        %340 = vset.pattern.permute.xlu0 0
        %341 = vperm.xlu0 %340, %v207
        %v342 = vpop.permute.xlu0 %341
        %345 = vset.pattern.permute.xlu0 0
        %346 = vperm.xlu0 %345, %v208
        %v347 = vpop.permute.xlu0 %346
        %350 = vset.pattern.permute.xlu0 0
        %351 = vperm.xlu0 %350, %v209
        %v352 = vpop.permute.xlu0 %351
        %355 = vset.pattern.permute.xlu0 0
        %356 = vperm.xlu0 %355, %v210
        %v357 = vpop.permute.xlu0 %356
        %360 = vset.pattern.permute.xlu0 0
        %361 = vperm.xlu0 %360, %v211
        %v362 = vpop.permute.xlu0 %361
        %365 = vset.pattern.permute.xlu0 0
        %366 = vperm.xlu0 %365, %v212
        %v367 = vpop.permute.xlu0 %366
        %370 = vset.pattern.permute.xlu0 0
        %371 = vperm.xlu0 %370, %v213
        %v372 = vpop.permute.xlu0 %371
        %375 = vset.pattern.permute.xlu0 0
        %376 = vperm.xlu0 %375, %v214
        %v377 = vpop.permute.xlu0 %376
        %380 = vset.pattern.permute.xlu0 0
        %381 = vperm.xlu0 %380, %v215
        %v382 = vpop.permute.xlu0 %381
        %385 = vset.pattern.permute.xlu0 0
        %386 = vperm.xlu0 %385, %v216
        %v387 = vpop.permute.xlu0 %386
        %390 = vset.pattern.permute.xlu0 0
        %391 = vperm.xlu0 %390, %v217
        %v392 = vpop.permute.xlu0 %391
        %395 = vset.pattern.permute.xlu0 0
        %396 = vperm.xlu0 %395, %v218
        %v397 = vpop.permute.xlu0 %396
        %400 = vset.pattern.permute.xlu0 0
        %401 = vperm.xlu0 %400, %v219
        %v402 = vpop.permute.xlu0 %401
        %405 = vset.pattern.permute.xlu0 0
        %406 = vperm.xlu0 %405, %v220
        %v407 = vpop.permute.xlu0 %406
        %410 = vset.pattern.permute.xlu0 0
        %411 = vperm.xlu0 %410, %v221
        %v412 = vpop.permute.xlu0 %411
        %v415 = vlaneseq
        %v416 = vshrl.u32 %v415, 7
        %v417 = vsub.s32 0, %v416
        %v418 = vrot.slane %v189, %v417
        %vm420 = vcmp.le.f32.partialorder %v257, %v418
        %vm421 = vcmp.le.f32.partialorder %v262, %v418
        %vm422 = vcmp.le.f32.partialorder %v267, %v418
        %vm423 = vcmp.le.f32.partialorder %v272, %v418
        %vm424 = vcmp.le.f32.partialorder %v277, %v418
        %vm425 = vcmp.le.f32.partialorder %v282, %v418
        %vm426 = vcmp.le.f32.partialorder %v287, %v418
        %vm427 = vcmp.le.f32.partialorder %v292, %v418
        %vm428 = vcmp.le.f32.partialorder %v297, %v418
        %vm429 = vcmp.le.f32.partialorder %v302, %v418
        %vm430 = vcmp.le.f32.partialorder %v307, %v418
        %vm431 = vcmp.le.f32.partialorder %v312, %v418
        %vm432 = vcmp.le.f32.partialorder %v317, %v418
        %vm433 = vcmp.le.f32.partialorder %v322, %v418
        %vm434 = vcmp.le.f32.partialorder %v327, %v418
        %vm435 = vcmp.le.f32.partialorder %v332, %v418
        %vm436 = vcmp.le.f32.partialorder %v337, %v418
        %vm437 = vcmp.le.f32.partialorder %v342, %v418
        %vm438 = vcmp.le.f32.partialorder %v347, %v418
        %vm439 = vcmp.le.f32.partialorder %v352, %v418
        %vm440 = vcmp.le.f32.partialorder %v357, %v418
        %vm441 = vcmp.le.f32.partialorder %v362, %v418
        %vm442 = vcmp.le.f32.partialorder %v367, %v418
        %vm443 = vcmp.le.f32.partialorder %v372, %v418
        %vm444 = vcmp.le.f32.partialorder %v377, %v418
        %vm445 = vcmp.le.f32.partialorder %v382, %v418
        %vm446 = vcmp.le.f32.partialorder %v387, %v418
        %vm447 = vcmp.le.f32.partialorder %v392, %v418
        %vm448 = vcmp.le.f32.partialorder %v397, %v418
        %vm449 = vcmp.le.f32.partialorder %v402, %v418
        %vm450 = vcmp.le.f32.partialorder %v407, %v418
        %vm451 = vcmp.le.f32.partialorder %v412, %v418
        %453 = vset.pattern.permute.xlu0 0
        %454 = vperm.xlu0 %453, %v222
        %v455 = vpop.permute.xlu0 %454
        %458 = vset.pattern.permute.xlu0 0
        %459 = vperm.xlu0 %458, %v223
        %v460 = vpop.permute.xlu0 %459
        %463 = vset.pattern.permute.xlu0 0
        %464 = vperm.xlu0 %463, %v224
        %v465 = vpop.permute.xlu0 %464
        %468 = vset.pattern.permute.xlu0 0
        %469 = vperm.xlu0 %468, %v225
        %v470 = vpop.permute.xlu0 %469
        %473 = vset.pattern.permute.xlu0 0
        %474 = vperm.xlu0 %473, %v226
        %v475 = vpop.permute.xlu0 %474
        %478 = vset.pattern.permute.xlu0 0
        %479 = vperm.xlu0 %478, %v227
        %v480 = vpop.permute.xlu0 %479
        %483 = vset.pattern.permute.xlu0 0
        %484 = vperm.xlu0 %483, %v228
        %v485 = vpop.permute.xlu0 %484
        %488 = vset.pattern.permute.xlu0 0
        %489 = vperm.xlu0 %488, %v229
        %v490 = vpop.permute.xlu0 %489
        %493 = vset.pattern.permute.xlu0 0
        %494 = vperm.xlu0 %493, %v230
        %v495 = vpop.permute.xlu0 %494
        %498 = vset.pattern.permute.xlu0 0
        %499 = vperm.xlu0 %498, %v231
        %v500 = vpop.permute.xlu0 %499
        %503 = vset.pattern.permute.xlu0 0
        %504 = vperm.xlu0 %503, %v232
        %v505 = vpop.permute.xlu0 %504
        %508 = vset.pattern.permute.xlu0 0
        %509 = vperm.xlu0 %508, %v233
        %v510 = vpop.permute.xlu0 %509
        %513 = vset.pattern.permute.xlu0 0
        %514 = vperm.xlu0 %513, %v234
        %v515 = vpop.permute.xlu0 %514
        %518 = vset.pattern.permute.xlu0 0
        %519 = vperm.xlu0 %518, %v235
        %v520 = vpop.permute.xlu0 %519
        %523 = vset.pattern.permute.xlu0 0
        %524 = vperm.xlu0 %523, %v236
        %v525 = vpop.permute.xlu0 %524
        %528 = vset.pattern.permute.xlu0 0
        %529 = vperm.xlu0 %528, %v237
        %v530 = vpop.permute.xlu0 %529
        %533 = vset.pattern.permute.xlu0 0
        %534 = vperm.xlu0 %533, %v238
        %v535 = vpop.permute.xlu0 %534
        %538 = vset.pattern.permute.xlu0 0
        %539 = vperm.xlu0 %538, %v239
        %v540 = vpop.permute.xlu0 %539
        %543 = vset.pattern.permute.xlu0 0
        %544 = vperm.xlu0 %543, %v240
        %v545 = vpop.permute.xlu0 %544
        %548 = vset.pattern.permute.xlu0 0
        %549 = vperm.xlu0 %548, %v241
        %v550 = vpop.permute.xlu0 %549
        %553 = vset.pattern.permute.xlu0 0
        %554 = vperm.xlu0 %553, %v242
        %v555 = vpop.permute.xlu0 %554
        %558 = vset.pattern.permute.xlu0 0
        %559 = vperm.xlu0 %558, %v243
        %v560 = vpop.permute.xlu0 %559
        %563 = vset.pattern.permute.xlu0 0
        %564 = vperm.xlu0 %563, %v244
        %v565 = vpop.permute.xlu0 %564
        %568 = vset.pattern.permute.xlu0 0
        %569 = vperm.xlu0 %568, %v245
        %v570 = vpop.permute.xlu0 %569
        %573 = vset.pattern.permute.xlu0 0
        %574 = vperm.xlu0 %573, %v246
        %v575 = vpop.permute.xlu0 %574
        %578 = vset.pattern.permute.xlu0 0
        %579 = vperm.xlu0 %578, %v247
        %v580 = vpop.permute.xlu0 %579
        %583 = vset.pattern.permute.xlu0 0
        %584 = vperm.xlu0 %583, %v248
        %v585 = vpop.permute.xlu0 %584
        %588 = vset.pattern.permute.xlu0 0
        %589 = vperm.xlu0 %588, %v249
        %v590 = vpop.permute.xlu0 %589
        %593 = vset.pattern.permute.xlu0 0
        %594 = vperm.xlu0 %593, %v250
        %v595 = vpop.permute.xlu0 %594
        %598 = vset.pattern.permute.xlu0 0
        %599 = vperm.xlu0 %598, %v251
        %v600 = vpop.permute.xlu0 %599
        %603 = vset.pattern.permute.xlu0 0
        %604 = vperm.xlu0 %603, %v252
        %v605 = vpop.permute.xlu0 %604
        %608 = vset.pattern.permute.xlu0 0
        %609 = vperm.xlu0 %608, %v253
        %v610 = vpop.permute.xlu0 %609
        %vm612 = vcmp.lt.f32.partialorder %v418, %v455
        %vm613 = vcmp.lt.f32.partialorder %v418, %v460
        %vm614 = vcmp.lt.f32.partialorder %v418, %v465
        %vm615 = vcmp.lt.f32.partialorder %v418, %v470
        %vm616 = vcmp.lt.f32.partialorder %v418, %v475
        %vm617 = vcmp.lt.f32.partialorder %v418, %v480
        %vm618 = vcmp.lt.f32.partialorder %v418, %v485
        %vm619 = vcmp.lt.f32.partialorder %v418, %v490
        %vm620 = vcmp.lt.f32.partialorder %v418, %v495
        %vm621 = vcmp.lt.f32.partialorder %v418, %v500
        %vm622 = vcmp.lt.f32.partialorder %v418, %v505
        %vm623 = vcmp.lt.f32.partialorder %v418, %v510
        %vm624 = vcmp.lt.f32.partialorder %v418, %v515
        %vm625 = vcmp.lt.f32.partialorder %v418, %v520
        %vm626 = vcmp.lt.f32.partialorder %v418, %v525
        %vm627 = vcmp.lt.f32.partialorder %v418, %v530
        %vm628 = vcmp.lt.f32.partialorder %v418, %v535
        %vm629 = vcmp.lt.f32.partialorder %v418, %v540
        %vm630 = vcmp.lt.f32.partialorder %v418, %v545
        %vm631 = vcmp.lt.f32.partialorder %v418, %v550
        %vm632 = vcmp.lt.f32.partialorder %v418, %v555
        %vm633 = vcmp.lt.f32.partialorder %v418, %v560
        %vm634 = vcmp.lt.f32.partialorder %v418, %v565
        %vm635 = vcmp.lt.f32.partialorder %v418, %v570
        %vm636 = vcmp.lt.f32.partialorder %v418, %v575
        %vm637 = vcmp.lt.f32.partialorder %v418, %v580
        %vm638 = vcmp.lt.f32.partialorder %v418, %v585
        %vm639 = vcmp.lt.f32.partialorder %v418, %v590
        %vm640 = vcmp.lt.f32.partialorder %v418, %v595
        %vm641 = vcmp.lt.f32.partialorder %v418, %v600
        %vm642 = vcmp.lt.f32.partialorder %v418, %v605
        %vm643 = vcmp.lt.f32.partialorder %v418, %v610
        %vm644 = vmand %vm420, %vm612
        %vm645 = vmand %vm421, %vm613
        %vm646 = vmand %vm422, %vm614
        %vm647 = vmand %vm423, %vm615
        %vm648 = vmand %vm424, %vm616
        %vm649 = vmand %vm425, %vm617
        %vm650 = vmand %vm426, %vm618
        %vm651 = vmand %vm427, %vm619
        %vm652 = vmand %vm428, %vm620
        %vm653 = vmand %vm429, %vm621
        %vm654 = vmand %vm430, %vm622
        %vm655 = vmand %vm431, %vm623
        %vm656 = vmand %vm432, %vm624
        %vm657 = vmand %vm433, %vm625
        %vm658 = vmand %vm434, %vm626
        %vm659 = vmand %vm435, %vm627
        %vm660 = vmand %vm436, %vm628
        %vm661 = vmand %vm437, %vm629
        %vm662 = vmand %vm438, %vm630
        %vm663 = vmand %vm439, %vm631
        %vm664 = vmand %vm440, %vm632
        %vm665 = vmand %vm441, %vm633
        %vm666 = vmand %vm442, %vm634
        %vm667 = vmand %vm443, %vm635
        %vm668 = vmand %vm444, %vm636
        %vm669 = vmand %vm445, %vm637
        %vm670 = vmand %vm446, %vm638
        %vm671 = vmand %vm447, %vm639
        %vm672 = vmand %vm448, %vm640
        %vm673 = vmand %vm449, %vm641
        %vm674 = vmand %vm450, %vm642
        %vm675 = vmand %vm451, %vm643
        %v676 = vsel %vm644, 1.0, 0.0
        %v677 = vsel %vm645, 1.0, 0.0
        %v678 = vsel %vm646, 1.0, 0.0
        %v679 = vsel %vm647, 1.0, 0.0
        %v680 = vsel %vm648, 1.0, 0.0
        %v681 = vsel %vm649, 1.0, 0.0
        %v682 = vsel %vm650, 1.0, 0.0
        %v683 = vsel %vm651, 1.0, 0.0
        %v684 = vsel %vm652, 1.0, 0.0
        %v685 = vsel %vm653, 1.0, 0.0
        %v686 = vsel %vm654, 1.0, 0.0
        %v687 = vsel %vm655, 1.0, 0.0
        %v688 = vsel %vm656, 1.0, 0.0
        %v689 = vsel %vm657, 1.0, 0.0
        %v690 = vsel %vm658, 1.0, 0.0
        %v691 = vsel %vm659, 1.0, 0.0
        %v692 = vsel %vm660, 1.0, 0.0
        %v693 = vsel %vm661, 1.0, 0.0
        %v694 = vsel %vm662, 1.0, 0.0
        %v695 = vsel %vm663, 1.0, 0.0
        %v696 = vsel %vm664, 1.0, 0.0
        %v697 = vsel %vm665, 1.0, 0.0
        %v698 = vsel %vm666, 1.0, 0.0
        %v699 = vsel %vm667, 1.0, 0.0
        %v700 = vsel %vm668, 1.0, 0.0
        %v701 = vsel %vm669, 1.0, 0.0
        %v702 = vsel %vm670, 1.0, 0.0
        %v703 = vsel %vm671, 1.0, 0.0
        %v704 = vsel %vm672, 1.0, 0.0
        %v705 = vsel %vm673, 1.0, 0.0
        %v706 = vsel %vm674, 1.0, 0.0
        %v707 = vsel %vm675, 1.0, 0.0
        %v708 = vld [vmem:[%s2] sm:$0xff]
        %v709 = vld [vmem:[%s2 + $0x8] sm:$0xff]
        %710 = vmatprep.subr.mxu0 0.0
        %711 = vmatpush1.msra.mxu0 %v676
        %712 = vmatprep.subr.mxu0 0.0
        %713 = vmatpush1.msra.mxu0 %v677
        %714 = vmatprep.subr.mxu0 0.0
        %715 = vmatpush1.msra.mxu0 %v678
        %716 = vmatprep.subr.mxu0 0.0
        %717 = vmatpush1.msra.mxu0 %v679
        %718 = vmatprep.subr.mxu0 0.0
        %719 = vmatpush1.msra.mxu0 %v680
        %720 = vmatprep.subr.mxu0 0.0
        %721 = vmatpush1.msra.mxu0 %v681
        %722 = vmatprep.subr.mxu0 0.0
        %723 = vmatpush1.msra.mxu0 %v682
        %724 = vmatprep.subr.mxu0 0.0
        %725 = vmatpush1.msra.mxu0 %v683
        %726 = vmatprep.subr.mxu0 0.0
        %727 = vmatpush1.msra.mxu0 %v684
        %728 = vmatprep.subr.mxu0 0.0
        %729 = vmatpush1.msra.mxu0 %v685
        %730 = vmatprep.subr.mxu0 0.0
        %731 = vmatpush1.msra.mxu0 %v686
        %732 = vmatprep.subr.mxu0 0.0
        %733 = vmatpush1.msra.mxu0 %v687
        %734 = vmatprep.subr.mxu0 0.0
        %735 = vmatpush1.msra.mxu0 %v688
        %736 = vmatprep.subr.mxu0 0.0
        %737 = vmatpush1.msra.mxu0 %v689
        %738 = vmatprep.subr.mxu0 0.0
        %739 = vmatpush1.msra.mxu0 %v690
        %740 = vmatprep.subr.mxu0 0.0
        %741 = vmatpush1.msra.mxu0 %v691
        %742 = vmatprep.subr.mxu0 0.0
        %743 = vmatpush1.msra.mxu0 %v692
        %744 = vmatprep.subr.mxu0 0.0
        %745 = vmatpush1.msra.mxu0 %v693
        %746 = vmatprep.subr.mxu0 0.0
        %747 = vmatpush1.msra.mxu0 %v694
        %748 = vmatprep.subr.mxu0 0.0
        %749 = vmatpush1.msra.mxu0 %v695
        %750 = vmatprep.subr.mxu0 0.0
        %751 = vmatpush1.msra.mxu0 %v696
        %752 = vmatprep.subr.mxu0 0.0
        %753 = vmatpush1.msra.mxu0 %v697
        %754 = vmatprep.subr.mxu0 0.0
        %755 = vmatpush1.msra.mxu0 %v698
        %756 = vmatprep.subr.mxu0 0.0
        %757 = vmatpush1.msra.mxu0 %v699
        %758 = vmatprep.subr.mxu0 0.0
        %759 = vmatpush1.msra.mxu0 %v700
        %760 = vmatprep.subr.mxu0 0.0
        %761 = vmatpush1.msra.mxu0 %v701
        %762 = vmatprep.subr.mxu0 0.0
        %763 = vmatpush1.msra.mxu0 %v702
        %764 = vmatprep.subr.mxu0 0.0
        %765 = vmatpush1.msra.mxu0 %v703
        %766 = vmatprep.subr.mxu0 0.0
        %767 = vmatpush1.msra.mxu0 %v704
        %768 = vmatprep.subr.mxu0 0.0
        %769 = vmatpush1.msra.mxu0 %v705
        %770 = vmatprep.subr.mxu0 0.0
        %771 = vmatpush1.msra.mxu0 %v706
        %772 = vmatprep.subr.mxu0 0.0
        %773 = vmatpush1.msra.mxu0 %v707
        %v774 = vand.u32 %v709, 4294901760
        %v775 = vsub.f32 %v709, %v774
        %v776 = vand.u32 %v775, 4294901760
        %v777 = vsub.f32 %v775, %v776
        %v778 = vand.u32 %v777, 4294901760
        %779 = vmatprep.mubr.f32.mxu0 %v778
        %v780 = vand.u32 %v708, 4294901760
        %v781 = vsub.f32 %v708, %v780
        %v782 = vand.u32 %v781, 4294901760
        %v783 = vsub.f32 %v781, %v782
        %v784 = vand.u32 %v783, 4294901760
        %785 = vmatmul.mubr.f32.gmra.mrb[0].mxu0 %v784
        %v786 = vpop.f32.mrb[0].mxu0
        %v787 = vadd.f32 0.0, %v786
        %v788 = vpop.f32.mrb[0].mxu0
        %789 = vdwg.mxu0
        %790 = vmatprep.subr.mxu0 0.0
        %v791 = vsub.f32 %v676, %v676
        %v792 = vand.u32 %v791, 4294901760
        %v793 = vsub.f32 %v791, %v792
        %v794 = vand.u32 %v793, 4294901760
        %795 = vmatpush1.msra.mxu0 %v794
        %796 = vmatprep.subr.mxu0 0.0
        %v797 = vsub.f32 %v677, %v677
        %v798 = vand.u32 %v797, 4294901760
        %v799 = vsub.f32 %v797, %v798
        %v800 = vand.u32 %v799, 4294901760
        %801 = vmatpush1.msra.mxu0 %v800
        %802 = vmatprep.subr.mxu0 0.0
        %v803 = vsub.f32 %v678, %v678
        %v804 = vand.u32 %v803, 4294901760
        %v805 = vsub.f32 %v803, %v804
        %v806 = vand.u32 %v805, 4294901760
        %807 = vmatpush1.msra.mxu0 %v806
        %808 = vmatprep.subr.mxu0 0.0
        %v809 = vsub.f32 %v679, %v679
        %v810 = vand.u32 %v809, 4294901760
        %v811 = vsub.f32 %v809, %v810
        %v812 = vand.u32 %v811, 4294901760
        %813 = vmatpush1.msra.mxu0 %v812
        %814 = vmatprep.subr.mxu0 0.0
        %v815 = vsub.f32 %v680, %v680
        %v816 = vand.u32 %v815, 4294901760
        %v817 = vsub.f32 %v815, %v816
        %v818 = vand.u32 %v817, 4294901760
        %819 = vmatpush1.msra.mxu0 %v818
        %820 = vmatprep.subr.mxu0 0.0
        %v821 = vsub.f32 %v681, %v681
        %v822 = vand.u32 %v821, 4294901760
        %v823 = vsub.f32 %v821, %v822
        %v824 = vand.u32 %v823, 4294901760
        %825 = vmatpush1.msra.mxu0 %v824
        %826 = vmatprep.subr.mxu0 0.0
        %v827 = vsub.f32 %v682, %v682
        %v828 = vand.u32 %v827, 4294901760
        %v829 = vsub.f32 %v827, %v828
        %v830 = vand.u32 %v829, 4294901760
        %831 = vmatpush1.msra.mxu0 %v830
        %832 = vmatprep.subr.mxu0 0.0
        %v833 = vsub.f32 %v683, %v683
        %v834 = vand.u32 %v833, 4294901760
        %v835 = vsub.f32 %v833, %v834
        %v836 = vand.u32 %v835, 4294901760
        %837 = vmatpush1.msra.mxu0 %v836
        %838 = vmatprep.subr.mxu0 0.0
        %v839 = vsub.f32 %v684, %v684
        %v840 = vand.u32 %v839, 4294901760
        %v841 = vsub.f32 %v839, %v840
        %v842 = vand.u32 %v841, 4294901760
        %843 = vmatpush1.msra.mxu0 %v842
        %844 = vmatprep.subr.mxu0 0.0
        %v845 = vsub.f32 %v685, %v685
        %v846 = vand.u32 %v845, 4294901760
        %v847 = vsub.f32 %v845, %v846
        %v848 = vand.u32 %v847, 4294901760
        %849 = vmatpush1.msra.mxu0 %v848
        %850 = vmatprep.subr.mxu0 0.0
        %v851 = vsub.f32 %v686, %v686
        %v852 = vand.u32 %v851, 4294901760
        %v853 = vsub.f32 %v851, %v852
        %v854 = vand.u32 %v853, 4294901760
        %855 = vmatpush1.msra.mxu0 %v854
        %856 = vmatprep.subr.mxu0 0.0
        %v857 = vsub.f32 %v687, %v687
        %v858 = vand.u32 %v857, 4294901760
        %v859 = vsub.f32 %v857, %v858
        %v860 = vand.u32 %v859, 4294901760
        %861 = vmatpush1.msra.mxu0 %v860
        %862 = vmatprep.subr.mxu0 0.0
        %v863 = vsub.f32 %v688, %v688
        %v864 = vand.u32 %v863, 4294901760
        %v865 = vsub.f32 %v863, %v864
        %v866 = vand.u32 %v865, 4294901760
        %867 = vmatpush1.msra.mxu0 %v866
        %868 = vmatprep.subr.mxu0 0.0
        %v869 = vsub.f32 %v689, %v689
        %v870 = vand.u32 %v869, 4294901760
        %v871 = vsub.f32 %v869, %v870
        %v872 = vand.u32 %v871, 4294901760
        %873 = vmatpush1.msra.mxu0 %v872
        %874 = vmatprep.subr.mxu0 0.0
        %v875 = vsub.f32 %v690, %v690
        %v876 = vand.u32 %v875, 4294901760
        %v877 = vsub.f32 %v875, %v876
        %v878 = vand.u32 %v877, 4294901760
        %879 = vmatpush1.msra.mxu0 %v878
        %880 = vmatprep.subr.mxu0 0.0
        %v881 = vsub.f32 %v691, %v691
        %v882 = vand.u32 %v881, 4294901760
        %v883 = vsub.f32 %v881, %v882
        %v884 = vand.u32 %v883, 4294901760
        %885 = vmatpush1.msra.mxu0 %v884
        %886 = vmatprep.subr.mxu0 0.0
        %v887 = vsub.f32 %v692, %v692
        %v888 = vand.u32 %v887, 4294901760
        %v889 = vsub.f32 %v887, %v888
        %v890 = vand.u32 %v889, 4294901760
        %891 = vmatpush1.msra.mxu0 %v890
        %892 = vmatprep.subr.mxu0 0.0
        %v893 = vsub.f32 %v693, %v693
        %v894 = vand.u32 %v893, 4294901760
        %v895 = vsub.f32 %v893, %v894
        %v896 = vand.u32 %v895, 4294901760
        %897 = vmatpush1.msra.mxu0 %v896
        %898 = vmatprep.subr.mxu0 0.0
        %v899 = vsub.f32 %v694, %v694
        %v900 = vand.u32 %v899, 4294901760
        %v901 = vsub.f32 %v899, %v900
        %v902 = vand.u32 %v901, 4294901760
        %903 = vmatpush1.msra.mxu0 %v902
        %904 = vmatprep.subr.mxu0 0.0
        %v905 = vsub.f32 %v695, %v695
        %v906 = vand.u32 %v905, 4294901760
        %v907 = vsub.f32 %v905, %v906
        %v908 = vand.u32 %v907, 4294901760
        %909 = vmatpush1.msra.mxu0 %v908
        %910 = vmatprep.subr.mxu0 0.0
        %v911 = vsub.f32 %v696, %v696
        %v912 = vand.u32 %v911, 4294901760
        %v913 = vsub.f32 %v911, %v912
        %v914 = vand.u32 %v913, 4294901760
        %915 = vmatpush1.msra.mxu0 %v914
        %916 = vmatprep.subr.mxu0 0.0
        %v917 = vsub.f32 %v697, %v697
        %v918 = vand.u32 %v917, 4294901760
        %v919 = vsub.f32 %v917, %v918
        %v920 = vand.u32 %v919, 4294901760
        %921 = vmatpush1.msra.mxu0 %v920
        %922 = vmatprep.subr.mxu0 0.0
        %v923 = vsub.f32 %v698, %v698
        %v924 = vand.u32 %v923, 4294901760
        %v925 = vsub.f32 %v923, %v924
        %v926 = vand.u32 %v925, 4294901760
        %927 = vmatpush1.msra.mxu0 %v926
        %928 = vmatprep.subr.mxu0 0.0
        %v929 = vsub.f32 %v699, %v699
        %v930 = vand.u32 %v929, 4294901760
        %v931 = vsub.f32 %v929, %v930
        %v932 = vand.u32 %v931, 4294901760
        %933 = vmatpush1.msra.mxu0 %v932
        %934 = vmatprep.subr.mxu0 0.0
        %v935 = vsub.f32 %v700, %v700
        %v936 = vand.u32 %v935, 4294901760
        %v937 = vsub.f32 %v935, %v936
        %v938 = vand.u32 %v937, 4294901760
        %939 = vmatpush1.msra.mxu0 %v938
        %940 = vmatprep.subr.mxu0 0.0
        %v941 = vsub.f32 %v701, %v701
        %v942 = vand.u32 %v941, 4294901760
        %v943 = vsub.f32 %v941, %v942
        %v944 = vand.u32 %v943, 4294901760
        %945 = vmatpush1.msra.mxu0 %v944
        %946 = vmatprep.subr.mxu0 0.0
        %v947 = vsub.f32 %v702, %v702
        %v948 = vand.u32 %v947, 4294901760
        %v949 = vsub.f32 %v947, %v948
        %v950 = vand.u32 %v949, 4294901760
        %951 = vmatpush1.msra.mxu0 %v950
        %952 = vmatprep.subr.mxu0 0.0
        %v953 = vsub.f32 %v703, %v703
        %v954 = vand.u32 %v953, 4294901760
        %v955 = vsub.f32 %v953, %v954
        %v956 = vand.u32 %v955, 4294901760
        %957 = vmatpush1.msra.mxu0 %v956
        %958 = vmatprep.subr.mxu0 0.0
        %v959 = vsub.f32 %v704, %v704
        %v960 = vand.u32 %v959, 4294901760
        %v961 = vsub.f32 %v959, %v960
        %v962 = vand.u32 %v961, 4294901760
        %963 = vmatpush1.msra.mxu0 %v962
        %964 = vmatprep.subr.mxu0 0.0
        %v965 = vsub.f32 %v705, %v705
        %v966 = vand.u32 %v965, 4294901760
        %v967 = vsub.f32 %v965, %v966
        %v968 = vand.u32 %v967, 4294901760
        %969 = vmatpush1.msra.mxu0 %v968
        %970 = vmatprep.subr.mxu0 0.0
        %v971 = vsub.f32 %v706, %v706
        %v972 = vand.u32 %v971, 4294901760
        %v973 = vsub.f32 %v971, %v972
        %v974 = vand.u32 %v973, 4294901760
        %975 = vmatpush1.msra.mxu0 %v974
        %976 = vmatprep.subr.mxu0 0.0
        %v977 = vsub.f32 %v707, %v707
        %v978 = vand.u32 %v977, 4294901760
        %v979 = vsub.f32 %v977, %v978
        %v980 = vand.u32 %v979, 4294901760
        %981 = vmatpush1.msra.mxu0 %v980
        %v982 = vand.u32 %v709, 4294901760
        %983 = vmatprep.mubr.f32.mxu0 %v982
        %v984 = vand.u32 %v708, 4294901760
        %985 = vmatmul.mubr.f32.gmra.mrb[0].mxu0 %v984
        %v986 = vpop.f32.mrb[0].mxu0
        %v987 = vadd.f32 %v787, %v986
        %v988 = vpop.f32.mrb[0].mxu0
        %989 = vdwg.mxu0
        %990 = vmatprep.subr.mxu0 0.0
        %v991 = vsub.f32 %v676, %v676
        %992 = vmatpush1.msra.mxu0 %v991
        %993 = vmatprep.subr.mxu0 0.0
        %v994 = vsub.f32 %v677, %v677
        %995 = vmatpush1.msra.mxu0 %v994
        %996 = vmatprep.subr.mxu0 0.0
        %v997 = vsub.f32 %v678, %v678
        %998 = vmatpush1.msra.mxu0 %v997
        %999 = vmatprep.subr.mxu0 0.0
        %v1000 = vsub.f32 %v679, %v679
        %1001 = vmatpush1.msra.mxu0 %v1000
        %1002 = vmatprep.subr.mxu0 0.0
        %v1003 = vsub.f32 %v680, %v680
        %1004 = vmatpush1.msra.mxu0 %v1003
        %1005 = vmatprep.subr.mxu0 0.0
        %v1006 = vsub.f32 %v681, %v681
        %1007 = vmatpush1.msra.mxu0 %v1006
        %1008 = vmatprep.subr.mxu0 0.0
        %v1009 = vsub.f32 %v682, %v682
        %1010 = vmatpush1.msra.mxu0 %v1009
        %1011 = vmatprep.subr.mxu0 0.0
        %v1012 = vsub.f32 %v683, %v683
        %1013 = vmatpush1.msra.mxu0 %v1012
        %1014 = vmatprep.subr.mxu0 0.0
        %v1015 = vsub.f32 %v684, %v684
        %1016 = vmatpush1.msra.mxu0 %v1015
        %1017 = vmatprep.subr.mxu0 0.0
        %v1018 = vsub.f32 %v685, %v685
        %1019 = vmatpush1.msra.mxu0 %v1018
        %1020 = vmatprep.subr.mxu0 0.0
        %v1021 = vsub.f32 %v686, %v686
        %1022 = vmatpush1.msra.mxu0 %v1021
        %1023 = vmatprep.subr.mxu0 0.0
        %v1024 = vsub.f32 %v687, %v687
        %1025 = vmatpush1.msra.mxu0 %v1024
        %1026 = vmatprep.subr.mxu0 0.0
        %v1027 = vsub.f32 %v688, %v688
        %1028 = vmatpush1.msra.mxu0 %v1027
        %1029 = vmatprep.subr.mxu0 0.0
        %v1030 = vsub.f32 %v689, %v689
        %1031 = vmatpush1.msra.mxu0 %v1030
        %1032 = vmatprep.subr.mxu0 0.0
        %v1033 = vsub.f32 %v690, %v690
        %1034 = vmatpush1.msra.mxu0 %v1033
        %1035 = vmatprep.subr.mxu0 0.0
        %v1036 = vsub.f32 %v691, %v691
        %1037 = vmatpush1.msra.mxu0 %v1036
        %1038 = vmatprep.subr.mxu0 0.0
        %v1039 = vsub.f32 %v692, %v692
        %1040 = vmatpush1.msra.mxu0 %v1039
        %1041 = vmatprep.subr.mxu0 0.0
        %v1042 = vsub.f32 %v693, %v693
        %1043 = vmatpush1.msra.mxu0 %v1042
        %1044 = vmatprep.subr.mxu0 0.0
        %v1045 = vsub.f32 %v694, %v694
        %1046 = vmatpush1.msra.mxu0 %v1045
        %1047 = vmatprep.subr.mxu0 0.0
        %v1048 = vsub.f32 %v695, %v695
        %1049 = vmatpush1.msra.mxu0 %v1048
        %1050 = vmatprep.subr.mxu0 0.0
        %v1051 = vsub.f32 %v696, %v696
        %1052 = vmatpush1.msra.mxu0 %v1051
        %1053 = vmatprep.subr.mxu0 0.0
        %v1054 = vsub.f32 %v697, %v697
        %1055 = vmatpush1.msra.mxu0 %v1054
        %1056 = vmatprep.subr.mxu0 0.0
        %v1057 = vsub.f32 %v698, %v698
        %1058 = vmatpush1.msra.mxu0 %v1057
        %1059 = vmatprep.subr.mxu0 0.0
        %v1060 = vsub.f32 %v699, %v699
        %1061 = vmatpush1.msra.mxu0 %v1060
        %1062 = vmatprep.subr.mxu0 0.0
        %v1063 = vsub.f32 %v700, %v700
        %1064 = vmatpush1.msra.mxu0 %v1063
        %1065 = vmatprep.subr.mxu0 0.0
        %v1066 = vsub.f32 %v701, %v701
        %1067 = vmatpush1.msra.mxu0 %v1066
        %1068 = vmatprep.subr.mxu0 0.0
        %v1069 = vsub.f32 %v702, %v702
        %1070 = vmatpush1.msra.mxu0 %v1069
        %1071 = vmatprep.subr.mxu0 0.0
        %v1072 = vsub.f32 %v703, %v703
        %1073 = vmatpush1.msra.mxu0 %v1072
        %1074 = vmatprep.subr.mxu0 0.0
        %v1075 = vsub.f32 %v704, %v704
        %1076 = vmatpush1.msra.mxu0 %v1075
        %1077 = vmatprep.subr.mxu0 0.0
        %v1078 = vsub.f32 %v705, %v705
        %1079 = vmatpush1.msra.mxu0 %v1078
        %1080 = vmatprep.subr.mxu0 0.0
        %v1081 = vsub.f32 %v706, %v706
        %1082 = vmatpush1.msra.mxu0 %v1081
        %1083 = vmatprep.subr.mxu0 0.0
        %v1084 = vsub.f32 %v707, %v707
        %1085 = vmatpush1.msra.mxu0 %v1084
        %v1086 = vand.u32 %v709, 4294901760
        %v1087 = vsub.f32 %v709, %v1086
        %1088 = vmatprep.mubr.f32.mxu0 %v1087
        %v1089 = vand.u32 %v708, 4294901760
        %v1090 = vsub.f32 %v708, %v1089
        %1091 = vmatmul.mubr.f32.gmra.mrb[0].mxu0 %v1090
        %v1092 = vpop.f32.mrb[0].mxu0
        %v1093 = vadd.f32 %v987, %v1092
        %v1094 = vpop.f32.mrb[0].mxu0
        %1095 = vdwg.mxu0
        %1096 = vmatprep.subr.mxu0 0.0
        %1097 = vmatpush1.msra.mxu0 %v676
        %1098 = vmatprep.subr.mxu0 0.0
        %1099 = vmatpush1.msra.mxu0 %v677
        %1100 = vmatprep.subr.mxu0 0.0
        %1101 = vmatpush1.msra.mxu0 %v678
        %1102 = vmatprep.subr.mxu0 0.0
        %1103 = vmatpush1.msra.mxu0 %v679
        %1104 = vmatprep.subr.mxu0 0.0
        %1105 = vmatpush1.msra.mxu0 %v680
        %1106 = vmatprep.subr.mxu0 0.0
        %1107 = vmatpush1.msra.mxu0 %v681
        %1108 = vmatprep.subr.mxu0 0.0
        %1109 = vmatpush1.msra.mxu0 %v682
        %1110 = vmatprep.subr.mxu0 0.0
        %1111 = vmatpush1.msra.mxu0 %v683
        %1112 = vmatprep.subr.mxu0 0.0
        %1113 = vmatpush1.msra.mxu0 %v684
        %1114 = vmatprep.subr.mxu0 0.0
        %1115 = vmatpush1.msra.mxu0 %v685
        %1116 = vmatprep.subr.mxu0 0.0
        %1117 = vmatpush1.msra.mxu0 %v686
        %1118 = vmatprep.subr.mxu0 0.0
        %1119 = vmatpush1.msra.mxu0 %v687
        %1120 = vmatprep.subr.mxu0 0.0
        %1121 = vmatpush1.msra.mxu0 %v688
        %1122 = vmatprep.subr.mxu0 0.0
        %1123 = vmatpush1.msra.mxu0 %v689
        %1124 = vmatprep.subr.mxu0 0.0
        %1125 = vmatpush1.msra.mxu0 %v690
        %1126 = vmatprep.subr.mxu0 0.0
        %1127 = vmatpush1.msra.mxu0 %v691
        %1128 = vmatprep.subr.mxu0 0.0
        %1129 = vmatpush1.msra.mxu0 %v692
        %1130 = vmatprep.subr.mxu0 0.0
        %1131 = vmatpush1.msra.mxu0 %v693
        %1132 = vmatprep.subr.mxu0 0.0
        %1133 = vmatpush1.msra.mxu0 %v694
        %1134 = vmatprep.subr.mxu0 0.0
        %1135 = vmatpush1.msra.mxu0 %v695
        %1136 = vmatprep.subr.mxu0 0.0
        %1137 = vmatpush1.msra.mxu0 %v696
        %1138 = vmatprep.subr.mxu0 0.0
        %1139 = vmatpush1.msra.mxu0 %v697
        %1140 = vmatprep.subr.mxu0 0.0
        %1141 = vmatpush1.msra.mxu0 %v698
        %1142 = vmatprep.subr.mxu0 0.0
        %1143 = vmatpush1.msra.mxu0 %v699
        %1144 = vmatprep.subr.mxu0 0.0
        %1145 = vmatpush1.msra.mxu0 %v700
        %1146 = vmatprep.subr.mxu0 0.0
        %1147 = vmatpush1.msra.mxu0 %v701
        %1148 = vmatprep.subr.mxu0 0.0
        %1149 = vmatpush1.msra.mxu0 %v702
        %1150 = vmatprep.subr.mxu0 0.0
        %1151 = vmatpush1.msra.mxu0 %v703
        %1152 = vmatprep.subr.mxu0 0.0
        %1153 = vmatpush1.msra.mxu0 %v704
        %1154 = vmatprep.subr.mxu0 0.0
        %1155 = vmatpush1.msra.mxu0 %v705
        %1156 = vmatprep.subr.mxu0 0.0
        %1157 = vmatpush1.msra.mxu0 %v706
        %1158 = vmatprep.subr.mxu0 0.0
        %1159 = vmatpush1.msra.mxu0 %v707
        %v1160 = vand.u32 %v709, 4294901760
        %v1161 = vsub.f32 %v709, %v1160
        %v1162 = vand.u32 %v1161, 4294901760
        %1163 = vmatprep.mubr.f32.mxu0 %v1162
        %v1164 = vand.u32 %v708, 4294901760
        %v1165 = vsub.f32 %v708, %v1164
        %v1166 = vand.u32 %v1165, 4294901760
        %1167 = vmatmul.mubr.f32.gmra.mrb[0].mxu0 %v1166
        %v1168 = vpop.f32.mrb[0].mxu0
        %v1169 = vadd.f32 %v1093, %v1168
        %v1170 = vpop.f32.mrb[0].mxu0
        %1171 = vdwg.mxu0
        %1172 = vmatprep.subr.mxu0 0.0
        %v1173 = vsub.f32 %v676, %v676
        %v1174 = vand.u32 %v1173, 4294901760
        %1175 = vmatpush1.msra.mxu0 %v1174
        %1176 = vmatprep.subr.mxu0 0.0
        %v1177 = vsub.f32 %v677, %v677
        %v1178 = vand.u32 %v1177, 4294901760
        %1179 = vmatpush1.msra.mxu0 %v1178
        %1180 = vmatprep.subr.mxu0 0.0
        %v1181 = vsub.f32 %v678, %v678
        %v1182 = vand.u32 %v1181, 4294901760
        %1183 = vmatpush1.msra.mxu0 %v1182
        %1184 = vmatprep.subr.mxu0 0.0
        %v1185 = vsub.f32 %v679, %v679
        %v1186 = vand.u32 %v1185, 4294901760
        %1187 = vmatpush1.msra.mxu0 %v1186
        %1188 = vmatprep.subr.mxu0 0.0
        %v1189 = vsub.f32 %v680, %v680
        %v1190 = vand.u32 %v1189, 4294901760
        %1191 = vmatpush1.msra.mxu0 %v1190
        %1192 = vmatprep.subr.mxu0 0.0
        %v1193 = vsub.f32 %v681, %v681
        %v1194 = vand.u32 %v1193, 4294901760
        %1195 = vmatpush1.msra.mxu0 %v1194
        %1196 = vmatprep.subr.mxu0 0.0
        %v1197 = vsub.f32 %v682, %v682
        %v1198 = vand.u32 %v1197, 4294901760
        %1199 = vmatpush1.msra.mxu0 %v1198
        %1200 = vmatprep.subr.mxu0 0.0
        %v1201 = vsub.f32 %v683, %v683
        %v1202 = vand.u32 %v1201, 4294901760
        %1203 = vmatpush1.msra.mxu0 %v1202
        %1204 = vmatprep.subr.mxu0 0.0
        %v1205 = vsub.f32 %v684, %v684
        %v1206 = vand.u32 %v1205, 4294901760
        %1207 = vmatpush1.msra.mxu0 %v1206
        %1208 = vmatprep.subr.mxu0 0.0
        %v1209 = vsub.f32 %v685, %v685
        %v1210 = vand.u32 %v1209, 4294901760
        %1211 = vmatpush1.msra.mxu0 %v1210
        %1212 = vmatprep.subr.mxu0 0.0
        %v1213 = vsub.f32 %v686, %v686
        %v1214 = vand.u32 %v1213, 4294901760
        %1215 = vmatpush1.msra.mxu0 %v1214
        %1216 = vmatprep.subr.mxu0 0.0
        %v1217 = vsub.f32 %v687, %v687
        %v1218 = vand.u32 %v1217, 4294901760
        %1219 = vmatpush1.msra.mxu0 %v1218
        %1220 = vmatprep.subr.mxu0 0.0
        %v1221 = vsub.f32 %v688, %v688
        %v1222 = vand.u32 %v1221, 4294901760
        %1223 = vmatpush1.msra.mxu0 %v1222
        %1224 = vmatprep.subr.mxu0 0.0
        %v1225 = vsub.f32 %v689, %v689
        %v1226 = vand.u32 %v1225, 4294901760
        %1227 = vmatpush1.msra.mxu0 %v1226
        %1228 = vmatprep.subr.mxu0 0.0
        %v1229 = vsub.f32 %v690, %v690
        %v1230 = vand.u32 %v1229, 4294901760
        %1231 = vmatpush1.msra.mxu0 %v1230
        %1232 = vmatprep.subr.mxu0 0.0
        %v1233 = vsub.f32 %v691, %v691
        %v1234 = vand.u32 %v1233, 4294901760
        %1235 = vmatpush1.msra.mxu0 %v1234
        %1236 = vmatprep.subr.mxu0 0.0
        %v1237 = vsub.f32 %v692, %v692
        %v1238 = vand.u32 %v1237, 4294901760
        %1239 = vmatpush1.msra.mxu0 %v1238
        %1240 = vmatprep.subr.mxu0 0.0
        %v1241 = vsub.f32 %v693, %v693
        %v1242 = vand.u32 %v1241, 4294901760
        %1243 = vmatpush1.msra.mxu0 %v1242
        %1244 = vmatprep.subr.mxu0 0.0
        %v1245 = vsub.f32 %v694, %v694
        %v1246 = vand.u32 %v1245, 4294901760
        %1247 = vmatpush1.msra.mxu0 %v1246
        %1248 = vmatprep.subr.mxu0 0.0
        %v1249 = vsub.f32 %v695, %v695
        %v1250 = vand.u32 %v1249, 4294901760
        %1251 = vmatpush1.msra.mxu0 %v1250
        %1252 = vmatprep.subr.mxu0 0.0
        %v1253 = vsub.f32 %v696, %v696
        %v1254 = vand.u32 %v1253, 4294901760
        %1255 = vmatpush1.msra.mxu0 %v1254
        %1256 = vmatprep.subr.mxu0 0.0
        %v1257 = vsub.f32 %v697, %v697
        %v1258 = vand.u32 %v1257, 4294901760
        %1259 = vmatpush1.msra.mxu0 %v1258
        %1260 = vmatprep.subr.mxu0 0.0
        %v1261 = vsub.f32 %v698, %v698
        %v1262 = vand.u32 %v1261, 4294901760
        %1263 = vmatpush1.msra.mxu0 %v1262
        %1264 = vmatprep.subr.mxu0 0.0
        %v1265 = vsub.f32 %v699, %v699
        %v1266 = vand.u32 %v1265, 4294901760
        %1267 = vmatpush1.msra.mxu0 %v1266
        %1268 = vmatprep.subr.mxu0 0.0
        %v1269 = vsub.f32 %v700, %v700
        %v1270 = vand.u32 %v1269, 4294901760
        %1271 = vmatpush1.msra.mxu0 %v1270
        %1272 = vmatprep.subr.mxu0 0.0
        %v1273 = vsub.f32 %v701, %v701
        %v1274 = vand.u32 %v1273, 4294901760
        %1275 = vmatpush1.msra.mxu0 %v1274
        %1276 = vmatprep.subr.mxu0 0.0
        %v1277 = vsub.f32 %v702, %v702
        %v1278 = vand.u32 %v1277, 4294901760
        %1279 = vmatpush1.msra.mxu0 %v1278
        %1280 = vmatprep.subr.mxu0 0.0
        %v1281 = vsub.f32 %v703, %v703
        %v1282 = vand.u32 %v1281, 4294901760
        %1283 = vmatpush1.msra.mxu0 %v1282
        %1284 = vmatprep.subr.mxu0 0.0
        %v1285 = vsub.f32 %v704, %v704
        %v1286 = vand.u32 %v1285, 4294901760
        %1287 = vmatpush1.msra.mxu0 %v1286
        %1288 = vmatprep.subr.mxu0 0.0
        %v1289 = vsub.f32 %v705, %v705
        %v1290 = vand.u32 %v1289, 4294901760
        %1291 = vmatpush1.msra.mxu0 %v1290
        %1292 = vmatprep.subr.mxu0 0.0
        %v1293 = vsub.f32 %v706, %v706
        %v1294 = vand.u32 %v1293, 4294901760
        %1295 = vmatpush1.msra.mxu0 %v1294
        %1296 = vmatprep.subr.mxu0 0.0
        %v1297 = vsub.f32 %v707, %v707
        %v1298 = vand.u32 %v1297, 4294901760
        %1299 = vmatpush1.msra.mxu0 %v1298
        %v1300 = vand.u32 %v709, 4294901760
        %1301 = vmatprep.mubr.f32.mxu0 %v1300
        %v1302 = vand.u32 %v708, 4294901760
        %1303 = vmatmul.mubr.f32.gmra.mrb[0].mxu0 %v1302
        %v1304 = vpop.f32.mrb[0].mxu0
        %v1305 = vadd.f32 %v1169, %v1304
        %v1306 = vpop.f32.mrb[0].mxu0
        %1307 = vdwg.mxu0
        %1308 = vmatprep.subr.mxu0 0.0
        %1309 = vmatpush1.msra.mxu0 %v676
        %1310 = vmatprep.subr.mxu0 0.0
        %1311 = vmatpush1.msra.mxu0 %v677
        %1312 = vmatprep.subr.mxu0 0.0
        %1313 = vmatpush1.msra.mxu0 %v678
        %1314 = vmatprep.subr.mxu0 0.0
        %1315 = vmatpush1.msra.mxu0 %v679
        %1316 = vmatprep.subr.mxu0 0.0
        %1317 = vmatpush1.msra.mxu0 %v680
        %1318 = vmatprep.subr.mxu0 0.0
        %1319 = vmatpush1.msra.mxu0 %v681
        %1320 = vmatprep.subr.mxu0 0.0
        %1321 = vmatpush1.msra.mxu0 %v682
        %1322 = vmatprep.subr.mxu0 0.0
        %1323 = vmatpush1.msra.mxu0 %v683
        %1324 = vmatprep.subr.mxu0 0.0
        %1325 = vmatpush1.msra.mxu0 %v684
        %1326 = vmatprep.subr.mxu0 0.0
        %1327 = vmatpush1.msra.mxu0 %v685
        %1328 = vmatprep.subr.mxu0 0.0
        %1329 = vmatpush1.msra.mxu0 %v686
        %1330 = vmatprep.subr.mxu0 0.0
        %1331 = vmatpush1.msra.mxu0 %v687
        %1332 = vmatprep.subr.mxu0 0.0
        %1333 = vmatpush1.msra.mxu0 %v688
        %1334 = vmatprep.subr.mxu0 0.0
        %1335 = vmatpush1.msra.mxu0 %v689
        %1336 = vmatprep.subr.mxu0 0.0
        %1337 = vmatpush1.msra.mxu0 %v690
        %1338 = vmatprep.subr.mxu0 0.0
        %1339 = vmatpush1.msra.mxu0 %v691
        %1340 = vmatprep.subr.mxu0 0.0
        %1341 = vmatpush1.msra.mxu0 %v692
        %1342 = vmatprep.subr.mxu0 0.0
        %1343 = vmatpush1.msra.mxu0 %v693
        %1344 = vmatprep.subr.mxu0 0.0
        %1345 = vmatpush1.msra.mxu0 %v694
        %1346 = vmatprep.subr.mxu0 0.0
        %1347 = vmatpush1.msra.mxu0 %v695
        %1348 = vmatprep.subr.mxu0 0.0
        %1349 = vmatpush1.msra.mxu0 %v696
        %1350 = vmatprep.subr.mxu0 0.0
        %1351 = vmatpush1.msra.mxu0 %v697
        %1352 = vmatprep.subr.mxu0 0.0
        %1353 = vmatpush1.msra.mxu0 %v698
        %1354 = vmatprep.subr.mxu0 0.0
        %1355 = vmatpush1.msra.mxu0 %v699
        %1356 = vmatprep.subr.mxu0 0.0
        %1357 = vmatpush1.msra.mxu0 %v700
        %1358 = vmatprep.subr.mxu0 0.0
        %1359 = vmatpush1.msra.mxu0 %v701
        %1360 = vmatprep.subr.mxu0 0.0
        %1361 = vmatpush1.msra.mxu0 %v702
        %1362 = vmatprep.subr.mxu0 0.0
        %1363 = vmatpush1.msra.mxu0 %v703
        %1364 = vmatprep.subr.mxu0 0.0
        %1365 = vmatpush1.msra.mxu0 %v704
        %1366 = vmatprep.subr.mxu0 0.0
        %1367 = vmatpush1.msra.mxu0 %v705
        %1368 = vmatprep.subr.mxu0 0.0
        %1369 = vmatpush1.msra.mxu0 %v706
        %1370 = vmatprep.subr.mxu0 0.0
        %1371 = vmatpush1.msra.mxu0 %v707
        %v1372 = vand.u32 %v709, 4294901760
        %1373 = vmatprep.mubr.f32.mxu0 %v1372
        %v1374 = vand.u32 %v708, 4294901760
        %1375 = vmatmul.mubr.f32.gmra.mrb[0].mxu0 %v1374
        %v1376 = vpop.f32.mrb[0].mxu0
        %v1377 = vadd.f32 %v1305, %v1376
        %v1378 = vpop.f32.mrb[0].mxu0
        %1379 = vdwg.mxu0
        %v1380 = vsub.f32 %v189, %v1377
        %v1382 = vlaneseq
        %v1383 = vshrl.u32 %v1382, 7
        %v1384 = vsub.s32 0, %v1383
        %v1385 = vrot.slane %v1380, %v1384
        %v1387 = vmul.f32 %v1377, %v1385
        %v1389 = vrot.slane %v1387, 1
        %v1391 = vadd.f32 %v1377, %v1389
        %1392 = vst [vmem:[%s185 - $0x1] sm:$0x2] %v1391
        %s1393 = sand.u32 %s115, 1
        %s1394 = scalar_lea.sflag [#allocation3], %s1393
        %s1395 = sand.u32 %s115, 1
        %s1396 = scalar_lea.vmem [#allocation2], %s1395
        // Predicated region
        $region37: #{tpu_custom_call.1} parent=35 // pred_check
          %p1397 = pneg %p125
        $region38: #{tpu_custom_call.1} parent=35 // pred_check_branch
          %1399 = sbr.rel (%p1397) target = $region40
        $region39: #{tpu_custom_call.1} parent=35 // pred_region
          %s1401 = ssub.s32 16, 16
          %1402 = vsyncadd %s1394, %s1401
          %s1403 = smul.addr %s18, 16
          %s1404 = scalar_lea.hbm %s4, %s1403
          %s1406 = sshll.u32 %s1396, 4
          %s1407 = int_to_ptr.vmem [resolvable:$true] %s1406
          %1409 = dma.vmem_to_hbm [thread:$0]  %s1407, 16, %s1404, %s1394
        $region40: #{tpu_custom_call.1} parent=35 // pred_fallthru
          _
      $region36: #{tpu_custom_call.1} parent=5 // pred_fallthru
        _
      %p1410 = scmp.le.s32.totalorder 2, %s13
      // Predicated region
      $region41: #{tpu_custom_call.1} parent=5 // pred_check
        %p1411 = pneg %p1410
      $region42: #{tpu_custom_call.1} parent=5 // pred_check_branch
        %1413 = sbr.rel (%p1411) target = $region44
      $region43: #{tpu_custom_call.1} parent=5 // pred_region
        %s1414 = ssub.s32 %s13, 2
        // Predicated region
        $region45: #{tpu_custom_call.1} parent=43 // pred_check
          %p1415 = pneg %p131
        $region46: #{tpu_custom_call.1} parent=43 // pred_check_branch
          %1417 = sbr.rel (%p1415) target = $region48
        $region47: #{tpu_custom_call.1} parent=43 // pred_region
          %s1418 = sand.u32 %s116, 1
          %s1419 = scalar_lea.sflag [#allocation3], %s1418
          %s1420 = sand.u32 %s116, 1
          %s1421 = scalar_lea.vmem [#allocation2], %s1420
          %1422 = dma.done %s1419, 16
        $region48: #{tpu_custom_call.1} parent=43 // pred_fallthru
          _
      $region44: #{tpu_custom_call.1} parent=5 // pred_fallthru
        _
    $region6: #{tpu_custom_call.1} parent=1 // loop_footer
      %s17 = sadd.s32 1, %s13
    $region7: #{tpu_custom_call.1} parent=1 // loop_footer_branch
      %12 = sbr.rel target = $region3
    $region8: #{tpu_custom_call.1} parent=1 // loop_exit
      _
    %1423 = vsyncpa [#allocation3], 1
    %s1424 = scalar_lea.sflag [#allocation3], 1
    %1425 = vsyncpa %s1424, 1

</llo_original>
